<compile_context>
chip_gen: v5e
topology: v5e:2x2
jax: 0.10.0
libtpu: 0.0.40
codegen_flags: <defaults>
</compile_context>

<pallas_src>
import jax
import jax.numpy as jnp
from jax.experimental import pallas as pl
from jax.experimental.pallas import tpu as pltpu


def _round_up(x, m):
    return (x + m - 1) // m * m


def _pick_tile(dim, cap, quantum):
    """Largest tile <= cap that divides `dim`; candidates are multiples of
    `quantum` (dim itself is always a multiple of `quantum` here)."""
    if dim <= cap:
        return dim
    for t in range(cap, quantum - 1, -quantum):
        if dim % t == 0:
            return t
    return quantum


# ---------------------------------------------------------------------------
# Fused kernel: o = relu(x @ w + b), K-reduction on grid axis 2.
# Output block is revisited across K (index_map ignores k) -> accumulate
# directly into the resident f32 output block, no scratch.
# ---------------------------------------------------------------------------
def _linear_relu_kernel(x_ref, w_ref, b_ref, o_ref):
    k = pl.program_id(2)

    @pl.when(k == 0)
    def _():
        # Fold the bias add into the accumulator init.
        o_ref[...] = jnp.broadcast_to(b_ref[...], o_ref.shape)

    # NOTE: default dot precision already passes 1e-5 vs. f32 reference here;
    # for very large K with strict f32 parity, a highest-precision dot could
    # be requested instead.
    o_ref[...] += jnp.dot(x_ref[...], w_ref[...],
                          preferred_element_type=jnp.float32)

    @pl.when(k == pl.num_programs(2) - 1)
    def _():
        o_ref[...] = jnp.maximum(o_ref[...], 0.0)


def _fused_linear_relu(x2d, w_pad, b_pad):
    """x2d: (M, K_pad); w_pad: (K_pad, N_pad); b_pad: (1, N_pad).
    Returns relu(x2d @ w_pad + b_pad): (M, N_pad) in f32."""
    m, kp = x2d.shape
    kp2, np_ = w_pad.shape
    assert kp == kp2 and b_pad.shape == (1, np_)
    assert kp % 128 == 0 and np_ % 128 == 0

    # Tile selection (fits comfortably in v7x's 64 MiB VMEM; tiny shapes use a
    # single full-extent block).  M is never padded: tm==m (full dim) when
    # small, otherwise 256 with a cdiv grid (OOB rows are read-garbage /
    # dropped-writes and get sliced off by the caller's out_dim slice).
    tm = m if m <= 256 else 256
    tn = _pick_tile(np_, cap=512, quantum=128)
    tk = _pick_tile(kp, cap=1024, quantum=128)

    # v7x megacore: if there would be a single (M, N) block on a non-trivial
    # problem, split N so both TensorCores get work (harmless on v5e/v6e).
    if (pl.cdiv(m, tm) == 1 and np_ // tn == 1 and np_ >= 256
            and m * kp * np_ >= (1 << 23)):
        tn = _pick_tile(np_, cap=(np_ // 2) // 128 * 128, quantum=128)

    grid = (pl.cdiv(m, tm), np_ // tn, kp // tk)

    itemsize = x2d.dtype.itemsize
    cost = pl.CostEstimate(
        flops=2 * m * kp * np_,
        transcendentals=0,
        bytes_accessed=(m * kp * itemsize + kp * np_ * itemsize
                        + np_ * 4 + m * np_ * 4),
    )

    return pl.pallas_call(
        _linear_relu_kernel,
        out_shape=jax.ShapeDtypeStruct((m, np_), jnp.float32),
        grid_spec=pltpu.PrefetchScalarGridSpec(
            num_scalar_prefetch=0,
            grid=grid,
            in_specs=[
                pl.BlockSpec((tm, tk), lambda i, j, kk: (i, kk)),
                pl.BlockSpec((tk, tn), lambda i, j, kk: (kk, j)),
                pl.BlockSpec((1, tn), lambda i, j, kk: (0, j)),
            ],
            out_specs=pl.BlockSpec((tm, tn), lambda i, j, kk: (i, j)),
        ),
        compiler_params=pltpu.CompilerParams(
            dimension_semantics=("parallel", "parallel", "arbitrary"),
            vmem_limit_bytes=32 * 1024 * 1024,
        ),
        cost_estimate=cost,
    )(x2d, w_pad, b_pad)


# ---------------------------------------------------------------------------
# Parameter prep (once) + forward wrapper (mirrors _Aggregation.forward)
# ---------------------------------------------------------------------------
def init_aggregation(key, input_dim, output_dim):
    """nn.Linear parameter shapes: weight (out, in), bias (out,)."""
    kw, kb = jax.random.split(key)
    bound = 1.0 / (input_dim ** 0.5)
    weight = jax.random.uniform(kw, (output_dim, input_dim), jnp.float32,
                                -bound, bound)
    bias = jax.random.uniform(kb, (output_dim,), jnp.float32, -bound, bound)
    return {"weight": weight, "bias": bias}


def prepare_aggregation_params(params, use_bf16=False):
    """One-time prep: transpose to (in, out), zero-pad to lane-dense
    (K_pad, N_pad) multiples of 128, optionally cast weight to bf16."""
    w = params["weight"]          # (out, in)
    b = params["bias"]            # (out,)
    out_dim, in_dim = w.shape
    kp = _round_up(in_dim, 128)
    np_ = _round_up(out_dim, 128)
    w_pad = jnp.zeros((kp, np_), jnp.float32).at[:in_dim, :out_dim].set(w.T)
    if use_bf16:
        w_pad = w_pad.astype(jnp.bfloat16)
    b_pad = jnp.zeros((1, np_), jnp.float32).at[0, :out_dim].set(b)
    return {"w": w_pad, "b": b_pad}


def aggregation_forward(w_pad, b_pad, x, *, out_dim):
    """relu(x @ weight.T + bias); x: (..., in_features)."""
    in_dim = x.shape[-1]
    kp, np_ = w_pad.shape
    lead = x.shape[:-1]

    x2d = x.reshape(-1, in_dim)
    if w_pad.dtype == jnp.bfloat16:
        x2d = x2d.astype(jnp.bfloat16)
    if in_dim != kp:
        # Zero-pad K only when unaligned (exact: extra columns contribute 0).
        x2d = jnp.pad(x2d, ((0, 0), (0, kp - in_dim)))

    y = _fused_linear_relu(x2d, w_pad, b_pad)       # (M, N_pad) f32
    if out_dim != np_:
        y = y[:, :out_dim]
    return y.reshape(*lead, out_dim)


# ---------------------------------------------------------------------------
# Demo
# ---------------------------------------------------------------------------
if __name__ == "__main__":
    key = jax.random.PRNGKey(0)
    IN_DIM, OUT_DIM = 256, 128          # lane-dense out_features
    B, S = 2, 16                        # leading dims flattened to 32 rows

    kparams, kx = jax.random.split(key)
    params = init_aggregation(kparams, IN_DIM, OUT_DIM)
    x = jax.random.normal(kx, (B, S, IN_DIM), jnp.float32)

    fwd = jax.jit(aggregation_forward, static_argnames=("out_dim",))

    # Exact-parity f32 path.
    prep = prepare_aggregation_params(params)                 # once, not per call
    y = jax.block_until_ready(fwd(prep["w"], prep["b"], x, out_dim=OUT_DIM))

    ref = jax.nn.relu(x @ params["weight"].T + params["bias"])
    assert y.shape == (B, S, OUT_DIM)
    assert jnp.allclose(y, ref, atol=1e-5, rtol=1e-5), \
        float(jnp.max(jnp.abs(y - ref)))

    # bf16 fast path (f32 accumulation; looser tolerance).
    prep16 = prepare_aggregation_params(params, use_bf16=True)
    y16 = jax.block_until_ready(fwd(prep16["w"], prep16["b"], x, out_dim=OUT_DIM))
    assert jnp.allclose(y16, ref, atol=3e-2, rtol=3e-2), \
        float(jnp.max(jnp.abs(y16 - ref)))

    print("KERNEL_OK")
</pallas_src>

<mosaic_0001>
module attributes {stable_mosaic.version = 11 : i64} {
  func.func @_linear_relu_kernel(%arg0: i32, %arg1: i32, %arg2: i32, %arg3: memref<32x256xf32, #tpu.memory_space<vmem>>, %arg4: memref<256x128xf32, #tpu.memory_space<vmem>>, %arg5: memref<1x128xf32, #tpu.memory_space<vmem>>, %arg6: memref<32x128xf32, #tpu.memory_space<vmem>>) attributes {dimension_semantics = [#tpu.dimension_semantics<parallel>, #tpu.dimension_semantics<parallel>, #tpu.dimension_semantics<arbitrary>], iteration_bounds = array<i64: 1, 1, 1>, scalar_prefetch = 0 : i64, scratch_operands = 0 : i64, tpu.core_type = #tpu.core_type<tc>, window_params = [{transform_indices = @transform_0, window_bounds = array<i64: 32, 256>}, {transform_indices = @transform_1, window_bounds = array<i64: 256, 128>}, {transform_indices = @transform_2, window_bounds = array<i64: 1, 128>}, {transform_indices = @transform_3, window_bounds = array<i64: 32, 128>}]} {
    %c0_i32 = arith.constant 0 : i32
    %0 = arith.cmpi eq, %arg2, %c0_i32 : i32
    %1 = arith.extui %0 : i1 to i32
    %c0_i32_0 = arith.constant 0 : i32
    %2 = arith.cmpi ne, %1, %c0_i32_0 : i32
    scf.if %2 {
      %c0_10 = arith.constant 0 : index
      %c0_11 = arith.constant 0 : index
      %12 = vector.load %arg5[%c0_10, %c0_11] : memref<1x128xf32, #tpu.memory_space<vmem>>, vector<1x128xf32>
      %13 = vector.shape_cast %12 : vector<1x128xf32> to vector<1x128xf32>
      %14 = vector.broadcast %13 : vector<1x128xf32> to vector<32x128xf32>
      %c0_12 = arith.constant 0 : index
      %c0_13 = arith.constant 0 : index
      %15 = vector.load %arg6[%c0_12, %c0_13] : memref<32x128xf32, #tpu.memory_space<vmem>>, vector<32x128xf32>
      tpu.vector_store %arg6[%c0_12, %c0_13], %14 {strides = array<i32>} : memref<32x128xf32, #tpu.memory_space<vmem>>, vector<32x128xf32>,
    } else {
    }
    %c0 = arith.constant 0 : index
    %c0_1 = arith.constant 0 : index
    %3 = vector.load %arg6[%c0, %c0_1] : memref<32x128xf32, #tpu.memory_space<vmem>>, vector<32x128xf32>
    %c0_2 = arith.constant 0 : index
    %c0_3 = arith.constant 0 : index
    %4 = vector.load %arg3[%c0_2, %c0_3] : memref<32x256xf32, #tpu.memory_space<vmem>>, vector<32x256xf32>
    %c0_4 = arith.constant 0 : index
    %c0_5 = arith.constant 0 : index
    %5 = vector.load %arg4[%c0_4, %c0_5] : memref<256x128xf32, #tpu.memory_space<vmem>>, vector<256x128xf32>
    %cst = arith.constant dense<0.000000e+00> : vector<32x128xf32>
    %6 = tpu.matmul %4, %5, %cst {dimension_numbers = #tpu.dot_dimension_numbers<[1], [0], [0], [1], [0, 0, 1, 1], [], []>} : vector<32x256xf32>, vector<256x128xf32>, vector<32x128xf32> -> vector<32x128xf32>
    %7 = arith.addf %3, %6 : vector<32x128xf32>
    %c0_6 = arith.constant 0 : index
    %c0_7 = arith.constant 0 : index
    %8 = vector.load %arg6[%c0_6, %c0_7] : memref<32x128xf32, #tpu.memory_space<vmem>>, vector<32x128xf32>
    tpu.vector_store %arg6[%c0_6, %c0_7], %7 {strides = array<i32>} : memref<32x128xf32, #tpu.memory_space<vmem>>, vector<32x128xf32>,
    %c0_i32_8 = arith.constant 0 : i32
    %9 = arith.cmpi eq, %arg2, %c0_i32_8 : i32
    %10 = arith.extui %9 : i1 to i32
    %c0_i32_9 = arith.constant 0 : i32
    %11 = arith.cmpi ne, %10, %c0_i32_9 : i32
    scf.if %11 {
      %c0_10 = arith.constant 0 : index
      %c0_11 = arith.constant 0 : index
      %12 = vector.load %arg6[%c0_10, %c0_11] : memref<32x128xf32, #tpu.memory_space<vmem>>, vector<32x128xf32>
      %cst_12 = arith.constant 0.000000e+00 : f32
      %13 = vector.broadcast %cst_12 : f32 to vector<32x128xf32>
      %14 = arith.maximumf %12, %13 : vector<32x128xf32>
      %c0_13 = arith.constant 0 : index
      %c0_14 = arith.constant 0 : index
      %15 = vector.load %arg6[%c0_13, %c0_14] : memref<32x128xf32, #tpu.memory_space<vmem>>, vector<32x128xf32>
      tpu.vector_store %arg6[%c0_13, %c0_14], %14 {strides = array<i32>} : memref<32x128xf32, #tpu.memory_space<vmem>>, vector<32x128xf32>,
    } else {
    }
    return
  }
  func.func @transform_0(%arg0: i32, %arg1: i32, %arg2: i32) -> (i32, i32) {
    %c0_i32 = arith.constant 0 : i32
    return %arg0, %arg2 : i32, i32
  }
  func.func @transform_1(%arg0: i32, %arg1: i32, %arg2: i32) -> (i32, i32) {
    %c0_i32 = arith.constant 0 : i32
    return %arg2, %arg1 : i32, i32
  }
  func.func @transform_2(%arg0: i32, %arg1: i32, %arg2: i32) -> (i32, i32) {
    %c0_i32 = arith.constant 0 : i32
    %c0_i32_0 = arith.constant 0 : i32
    return %c0_i32, %arg1 : i32, i32
  }
  func.func @transform_3(%arg0: i32, %arg1: i32, %arg2: i32) -> (i32, i32) {
    %c0_i32 = arith.constant 0 : i32
    return %arg0, %arg1 : i32, i32
  }
}

</mosaic_0001>

<llo_original>
// kernel: aggregation_forward.1
$region0: #{aggregation_forward.1}
  #allocation0 [shape = 'u32[]', space=smem, size = 0x4, offset = 0x4, fixed_abs, tag = 'smem constant byte address 0x4 - core index']
  #allocation1 [shape = 'u32[72,128]{1,0:T(1,128)}', space=vmem, size = 0x9000, scoped, tag = 'internal scratch']
  %s0 = inlined_call_operand.hbm [shape: f32[32,256], index: 0, kind: input, shape index: {}]
  %s1 = inlined_call_operand.hbm [shape: f32[256,128], index: 1, kind: input, shape index: {}]
  %s2 = inlined_call_operand.vmem [shape: f32[1,128], index: 2, kind: input, shape index: {}]
  %s3 = inlined_call_operand.hbm [shape: f32[32,128], index: 3, kind: output, shape index: {}]
  %s4 = sld [smem:[#allocation0]]
  $region38: #{aggregation_forward.1} parent=0
    _
  %s6 = ssub.s32 1, %s4
  %s7 = scalar_select 0, %s6, %s4
  $region1: #{aggregation_forward.1} parent=0
    #allocation2 [shape = 'u8[32768]{0}', space=vmem, size = 0x8000, scoped, tag = 'input window, operand 0, single buffered']
    #allocation3 [shape = 's32[1]{0}', space=sflag, size = 0x4, scoped, tag = 'scoped memory for aggregation_forward.1']
    #allocation4 [shape = 's32[1]{0}', space=sflag, size = 0x4, scoped, tag = 'scoped memory for aggregation_forward.1']
    #allocation5 [shape = 'u8[131072]{0}', space=vmem, size = 0x20000, scoped, tag = 'input window, operand 1, single buffered']
    #allocation6 [shape = 's32[1]{0}', space=sflag, size = 0x4, scoped, tag = 'scoped memory for aggregation_forward.1']
    #allocation7 [shape = 'u8[16384]{0}', space=vmem, size = 0x4000, scoped, tag = 'output window, operand 0, single buffered']
    %8 = vsyncpa [#allocation3], 0
    %9 = vsyncpa [#allocation6], 0
    %10 = vsyncpa [#allocation4], 0
    // Predicated region
    $region2: #{aggregation_forward.1} parent=1 // pred_check
      _
    $region3: #{aggregation_forward.1} parent=1 // pred_check_branch
      %12 = sbr.rel (0) target = $region5
    $region4: #{aggregation_forward.1} parent=1 // pred_region
      %14 = vsyncadd [#allocation3], 0
      %s15 = sshll.u32 %s0, 4
      %s16 = int_to_ptr.hbm [resolvable:$true] %s15
      %s17 = sshll.u32 [#allocation2], 4
      %s18 = int_to_ptr.vmem [resolvable:$true] %s17
      %23 = dma.hbm_to_vmem [thread:$0]  %s16, 1024, %s18, [#allocation3], 256, 256, 16
    $region5: #{aggregation_forward.1} parent=1 // pred_fallthru
      _
    // Predicated region
    $region6: #{aggregation_forward.1} parent=1 // pred_check
      _
    $region7: #{aggregation_forward.1} parent=1 // pred_check_branch
      %25 = sbr.rel (0) target = $region9
    $region8: #{aggregation_forward.1} parent=1 // pred_region
      %27 = vsyncadd [#allocation6], 0
      %s28 = sshll.u32 %s1, 4
      %s29 = int_to_ptr.hbm [resolvable:$true] %s28
      %s30 = sshll.u32 [#allocation5], 4
      %s31 = int_to_ptr.vmem [resolvable:$true] %s30
      %36 = dma.hbm_to_vmem [thread:$0]  %s29, 4096, %s31, [#allocation6], 128, 128, 8
    $region9: #{aggregation_forward.1} parent=1 // pred_fallthru
      _
    // Predicated region
    $region10: #{aggregation_forward.1} parent=1 // pred_check
      _
    $region11: #{aggregation_forward.1} parent=1 // pred_check_branch
      %38 = sbr.rel (0) target = $region13
    $region12: #{aggregation_forward.1} parent=1 // pred_region
      _
    $region13: #{aggregation_forward.1} parent=1 // pred_fallthru
      _
    // Predicated region
    $region14: #{aggregation_forward.1} parent=1 // pred_check
      _
    $region15: #{aggregation_forward.1} parent=1 // pred_check_branch
      %40 = sbr.rel (0) target = $region17
    $region16: #{aggregation_forward.1} parent=1 // pred_region
      %42 = dma.done [#allocation3], 1024
    $region17: #{aggregation_forward.1} parent=1 // pred_fallthru
      _
    // Predicated region
    $region18: #{aggregation_forward.1} parent=1 // pred_check
      _
    $region19: #{aggregation_forward.1} parent=1 // pred_check_branch
      %44 = sbr.rel (0) target = $region21
    $region20: #{aggregation_forward.1} parent=1 // pred_region
      %46 = dma.done [#allocation6], 4096
    $region21: #{aggregation_forward.1} parent=1 // pred_fallthru
      _
    %p47 = scmp.eq.s32.totalorder 0, 0
    // Predicated region
    $region22: #{aggregation_forward.1} parent=1 // pred_check
      %p48 = pneg %p47
    $region23: #{aggregation_forward.1} parent=1 // pred_check_branch
      %50 = sbr.rel (%p48) target = $region25
    $region24: #{aggregation_forward.1} parent=1 // pred_region
      %v51 = vld [vmem:[%s2] sm:$0x1]
      %v53 = vperm.slane %v51, 0
      %55 = vst [vmem:[#allocation7] sm:$0xff] %v53
      %56 = vst [vmem:[#allocation7 + $0x8] sm:$0xff] %v53
      %57 = vst [vmem:[#allocation7 + $0x10] sm:$0xff] %v53
      %58 = vst [vmem:[#allocation7 + $0x18] sm:$0xff] %v53
    $region25: #{aggregation_forward.1} parent=1 // pred_fallthru
      _
    %v59 = vld [vmem:[#allocation7] sm:$0xff]
    %v60 = vld [vmem:[#allocation7 + $0x8] sm:$0xff]
    %v61 = vld [vmem:[#allocation7 + $0x10] sm:$0xff]
    %v62 = vld [vmem:[#allocation7 + $0x18] sm:$0xff]
    %v63 = vld [vmem:[#allocation2] sm:$0xff]
    %v64 = vld [vmem:[#allocation2 + $0x8] sm:$0xff]
    %v65 = vld [vmem:[#allocation2 + $0x10] sm:$0xff]
    %v66 = vld [vmem:[#allocation2 + $0x18] sm:$0xff]
    %v67 = vld [vmem:[#allocation2 + $0x20] sm:$0xff]
    %v68 = vld [vmem:[#allocation2 + $0x28] sm:$0xff]
    %v69 = vld [vmem:[#allocation2 + $0x30] sm:$0xff]
    %v70 = vld [vmem:[#allocation2 + $0x38] sm:$0xff]
    %v71 = vld [vmem:[#allocation5] sm:$0xff]
    %v72 = vld [vmem:[#allocation5 + $0x8] sm:$0xff]
    %v73 = vld [vmem:[#allocation5 + $0x10] sm:$0xff]
    %v74 = vld [vmem:[#allocation5 + $0x18] sm:$0xff]
    %v75 = vld [vmem:[#allocation5 + $0x20] sm:$0xff]
    %v76 = vld [vmem:[#allocation5 + $0x28] sm:$0xff]
    %v77 = vld [vmem:[#allocation5 + $0x30] sm:$0xff]
    %v78 = vld [vmem:[#allocation5 + $0x38] sm:$0xff]
    %v79 = vld [vmem:[#allocation5 + $0x40] sm:$0xff]
    %v80 = vld [vmem:[#allocation5 + $0x48] sm:$0xff]
    %v81 = vld [vmem:[#allocation5 + $0x50] sm:$0xff]
    %v82 = vld [vmem:[#allocation5 + $0x58] sm:$0xff]
    %v83 = vld [vmem:[#allocation5 + $0x60] sm:$0xff]
    %v84 = vld [vmem:[#allocation5 + $0x68] sm:$0xff]
    %v85 = vld [vmem:[#allocation5 + $0x70] sm:$0xff]
    %v86 = vld [vmem:[#allocation5 + $0x78] sm:$0xff]
    %v87 = vld [vmem:[#allocation5 + $0x80] sm:$0xff]
    %v88 = vld [vmem:[#allocation5 + $0x88] sm:$0xff]
    %v89 = vld [vmem:[#allocation5 + $0x90] sm:$0xff]
    %v90 = vld [vmem:[#allocation5 + $0x98] sm:$0xff]
    %v91 = vld [vmem:[#allocation5 + $0xa0] sm:$0xff]
    %v92 = vld [vmem:[#allocation5 + $0xa8] sm:$0xff]
    %v93 = vld [vmem:[#allocation5 + $0xb0] sm:$0xff]
    %v94 = vld [vmem:[#allocation5 + $0xb8] sm:$0xff]
    %v95 = vld [vmem:[#allocation5 + $0xc0] sm:$0xff]
    %v96 = vld [vmem:[#allocation5 + $0xc8] sm:$0xff]
    %v97 = vld [vmem:[#allocation5 + $0xd0] sm:$0xff]
    %v98 = vld [vmem:[#allocation5 + $0xd8] sm:$0xff]
    %v99 = vld [vmem:[#allocation5 + $0xe0] sm:$0xff]
    %v100 = vld [vmem:[#allocation5 + $0xe8] sm:$0xff]
    %v101 = vld [vmem:[#allocation5 + $0xf0] sm:$0xff]
    %v102 = vld [vmem:[#allocation5 + $0xf8] sm:$0xff]
    %103 = vmatpush.msra.mxu0 %v86
    %104 = vmatpush.msra.mxu0 %v85
    %105 = vmatpush.msra.mxu0 %v84
    %106 = vmatpush.msra.mxu0 %v83
    %107 = vmatpush.msra.mxu0 %v82
    %108 = vmatpush.msra.mxu0 %v81
    %109 = vmatpush.msra.mxu0 %v80
    %110 = vmatpush.msra.mxu0 %v79
    %111 = vmatpush.msra.mxu0 %v78
    %112 = vmatpush.msra.mxu0 %v77
    %113 = vmatpush.msra.mxu0 %v76
    %114 = vmatpush.msra.mxu0 %v75
    %115 = vmatpush.msra.mxu0 %v74
    %116 = vmatpush.msra.mxu0 %v73
    %117 = vmatpush.msra.mxu0 %v72
    %118 = vmatpush.msra.mxu0 %v71
    %119 = vmatmul.f32.gmra.mxu0 %v63
    %v120 = vpop.f32.mrf.mxu0
    %v121 = vadd.f32 0.0, %v120
    %122 = vmatmul.f32.gmra.mxu0 %v65
    %v123 = vpop.f32.mrf.mxu0
    %v124 = vadd.f32 0.0, %v123
    %125 = vmatmul.f32.gmra.mxu0 %v67
    %v126 = vpop.f32.mrf.mxu0
    %v127 = vadd.f32 0.0, %v126
    %128 = vmatmul.f32.gmra.mxu0 %v69
    %v129 = vpop.f32.mrf.mxu0
    %v130 = vadd.f32 0.0, %v129
    %131 = vdwg.mxu0
    %132 = vmatpush.msra.mxu0 %v102
    %133 = vmatpush.msra.mxu0 %v101
    %134 = vmatpush.msra.mxu0 %v100
    %135 = vmatpush.msra.mxu0 %v99
    %136 = vmatpush.msra.mxu0 %v98
    %137 = vmatpush.msra.mxu0 %v97
    %138 = vmatpush.msra.mxu0 %v96
    %139 = vmatpush.msra.mxu0 %v95
    %140 = vmatpush.msra.mxu0 %v94
    %141 = vmatpush.msra.mxu0 %v93
    %142 = vmatpush.msra.mxu0 %v92
    %143 = vmatpush.msra.mxu0 %v91
    %144 = vmatpush.msra.mxu0 %v90
    %145 = vmatpush.msra.mxu0 %v89
    %146 = vmatpush.msra.mxu0 %v88
    %147 = vmatpush.msra.mxu0 %v87
    %148 = vmatmul.f32.gmra.mxu0 %v64
    %v149 = vpop.f32.mrf.mxu0
    %v150 = vadd.f32 %v121, %v149
    %151 = vmatmul.f32.gmra.mxu0 %v66
    %v152 = vpop.f32.mrf.mxu0
    %v153 = vadd.f32 %v124, %v152
    %154 = vmatmul.f32.gmra.mxu0 %v68
    %v155 = vpop.f32.mrf.mxu0
    %v156 = vadd.f32 %v127, %v155
    %157 = vmatmul.f32.gmra.mxu0 %v70
    %v158 = vpop.f32.mrf.mxu0
    %v159 = vadd.f32 %v130, %v158
    %160 = vdwg.mxu0
    %v161 = vadd.f32 %v59, %v150
    %v162 = vadd.f32 %v60, %v153
    %v163 = vadd.f32 %v61, %v156
    %v164 = vadd.f32 %v62, %v159
    %165 = vst [vmem:[#allocation7] sm:$0xff] %v161
    %166 = vst [vmem:[#allocation7 + $0x8] sm:$0xff] %v162
    %167 = vst [vmem:[#allocation7 + $0x10] sm:$0xff] %v163
    %168 = vst [vmem:[#allocation7 + $0x18] sm:$0xff] %v164
    // Predicated region
    $region26: #{aggregation_forward.1} parent=1 // pred_check
      %p169 = pneg %p47
    $region27: #{aggregation_forward.1} parent=1 // pred_check_branch
      %171 = sbr.rel (%p169) target = $region29
    $region28: #{aggregation_forward.1} parent=1 // pred_region
      %v172 = vld [vmem:[#allocation7] sm:$0xff]
      %v173 = vld [vmem:[#allocation7 + $0x8] sm:$0xff]
      %v174 = vld [vmem:[#allocation7 + $0x10] sm:$0xff]
      %v175 = vld [vmem:[#allocation7 + $0x18] sm:$0xff]
      %v176 = vmax.f32 %v172, 0.0
      %v177 = vmax.f32 %v173, 0.0
      %v178 = vmax.f32 %v174, 0.0
      %v179 = vmax.f32 %v175, 0.0
      %180 = vst [vmem:[#allocation7] sm:$0xff] %v176
      %181 = vst [vmem:[#allocation7 + $0x8] sm:$0xff] %v177
      %182 = vst [vmem:[#allocation7 + $0x10] sm:$0xff] %v178
      %183 = vst [vmem:[#allocation7 + $0x18] sm:$0xff] %v179
    $region29: #{aggregation_forward.1} parent=1 // pred_fallthru
      _
    // Predicated region
    $region30: #{aggregation_forward.1} parent=1 // pred_check
      _
    $region31: #{aggregation_forward.1} parent=1 // pred_check_branch
      %185 = sbr.rel (0) target = $region33
    $region32: #{aggregation_forward.1} parent=1 // pred_region
      %187 = vsyncadd [#allocation4], 0
      %s188 = sshll.u32 [#allocation7], 4
      %s189 = int_to_ptr.vmem [resolvable:$true] %s188
      %s190 = sshll.u32 %s3, 4
      %s191 = int_to_ptr.hbm [resolvable:$true] %s190
      %196 = dma.vmem_to_hbm [thread:$0]  %s189, 512, %s191, [#allocation4], 128, 128, 8
    $region33: #{aggregation_forward.1} parent=1 // pred_fallthru
      _
    // Predicated region
    $region34: #{aggregation_forward.1} parent=1 // pred_check
      _
    $region35: #{aggregation_forward.1} parent=1 // pred_check_branch
      %198 = sbr.rel (0) target = $region37
    $region36: #{aggregation_forward.1} parent=1 // pred_region
      %200 = dma.done [#allocation4], 512
    $region37: #{aggregation_forward.1} parent=1 // pred_fallthru
      _
    %201 = vsyncpa [#allocation3], 1
    %202 = vsyncpa [#allocation6], 1
    %203 = vsyncpa [#allocation4], 1

</llo_original>
